<compile_context>
chip_gen: v5e
topology: v5e:2x2
jax: 0.10.0
libtpu: 0.0.40
codegen_flags: <defaults>
</compile_context>

<pallas_src>
import math
import functools

import jax
import jax.numpy as jnp
from jax.experimental import pallas as pl
from jax.experimental.pallas import tpu as pltpu


# ----------------------------- kernels -------------------------------------- #

def _linear_noacc_kernel(x_ref, wt_ref, b_ref, o_ref):
    # Full-K contraction in one shot: y = x @ Wt + b  (no accumulator scratch).
    acc = jnp.dot(x_ref[...], wt_ref[...], preferred_element_type=jnp.float32)
    o_ref[...] = (acc + b_ref[...]).astype(o_ref.dtype)


def _linear_acc_kernel(x_ref, wt_ref, b_ref, o_ref, acc_ref):
    # Fallback: grid (i over batch tiles, j over out-feature tiles, k contraction).
    k = pl.program_id(2)

    @pl.when(k == 0)
    def _():
        acc_ref[...] = jnp.zeros_like(acc_ref)

    acc_ref[...] += jnp.dot(x_ref[...], wt_ref[...],
                            preferred_element_type=jnp.float32)

    @pl.when(k == pl.num_programs(2) - 1)
    def _():
        o_ref[...] = (acc_ref[...] + b_ref[...]).astype(o_ref.dtype)


# ----------------------------- helpers -------------------------------------- #

def _round_up(x, m):
    return ((x + m - 1) // m) * m


def _pick_tile(dim, cap, step):
    """Largest multiple of `step` <= cap that divides `dim` (dim % step == 0)."""
    t = min(dim, cap)
    t = max(step, (t // step) * step)
    while dim % t != 0:
        t -= step
    return t


def _pick_tm(B_pad, cap, want_parallel=False):
    """Batch tile: multiple of 8, divides B_pad; optionally keep >= 2 tiles
    so both v7x TensorCores get work on the parallel batch axis."""
    cap = min(cap, B_pad)
    if want_parallel and B_pad >= 16:
        cap = min(cap, B_pad // 2)
    t = max(8, (cap // 8) * 8)
    while B_pad % t != 0:
        t -= 8
    return t


@functools.lru_cache(maxsize=1)
def _vmem_budget_bytes():
    """Generation-aware scoped-VMEM budget (75% of physical, capped at 96 MiB).
    v5e/v6e (128 MiB physical) -> 96 MiB; v7x (64 MiB physical) -> 48 MiB."""
    phys = 64 * 1024 * 1024  # conservative default = v7x per-TC VMEM
    try:
        info = pltpu.get_tpu_info()
        phys = int(getattr(info, "vmem_capacity_bytes", phys))
    except Exception:
        pass
    return min(int(phys * 0.75), 96 * 1024 * 1024)


def _select_noacc_tiling(B_pad, D_pad, x_bytes, w_bytes, out_bytes, budget):
    """Pick (tm, tn) for the no-accumulator path.  Prefer tn == D_pad
    (whole-W-resident: W DMAed once), shrinking tn only if VMEM is tight."""
    tn = D_pad
    while tn >= 128:
        if D_pad % tn == 0:
            fixed = 2 * D_pad * tn * w_bytes + 4 * tn * 4      # Wt dbuf + bias
            per_row = 2 * D_pad * x_bytes + 2 * tn * out_bytes + tn * 4
            if budget > fixed:
                tm_cap = (budget - fixed) // per_row
                if tm_cap >= 8:
                    want_parallel = (D_pad // tn) < 2          # j-grid == 1
                    tm = _pick_tm(B_pad, int(tm_cap), want_parallel=want_parallel)
                    return tm, tn
        tn -= 128
    return None, None


# ----------------------------- pallas linear --------------------------------- #

def _linear_pallas(x, prepared, *, force_acc_path=False,
                   acc_tile_caps=(256, 512, 2048)):
    """y = x @ W.T + b using pre-prepared (padded, transposed, cast) params."""
    D = prepared["repr_dim"]
    D_pad = prepared["d_pad"]
    wt = prepared["wt"]          # (D_pad, D_pad), already W.T, padded, mm_dtype
    bias = prepared["bias"]      # (1, D_pad), f32
    mm_dtype = wt.dtype

    B = x.shape[0]
    out_dtype = x.dtype
    B_pad = _round_up(B, 8)

    xp = x
    if B_pad != B or D_pad != D:
        xp = jnp.pad(x, ((0, B_pad - B), (0, D_pad - D)))
    if xp.dtype != mm_dtype:
        xp = xp.astype(mm_dtype)

    budget = _vmem_budget_bytes()
    xb = jnp.dtype(mm_dtype).itemsize
    wb = jnp.dtype(mm_dtype).itemsize
    ob = jnp.dtype(out_dtype).itemsize

    tm = tn = None
    if not force_acc_path:
        tm, tn = _select_noacc_tiling(B_pad, D_pad, xb, wb, ob, budget)

    if tm is not None:
        # --- fast path: full-K contraction, W resident (tn == D_pad) or column
        # tiled; no accumulator, no k axis, both grid axes parallel -----------
        grid = (B_pad // tm, D_pad // tn)
        out = pl.pallas_call(
            _linear_noacc_kernel,
            out_shape=jax.ShapeDtypeStruct((B_pad, D_pad), out_dtype),
            grid_spec=pltpu.PrefetchScalarGridSpec(
                num_scalar_prefetch=0,
                grid=grid,
                in_specs=[
                    pl.BlockSpec((tm, D_pad), lambda i, j: (i, 0)),   # x rows
                    pl.BlockSpec((D_pad, tn), lambda i, j: (0, j)),   # Wt (resident if tn==D_pad)
                    pl.BlockSpec((1, tn), lambda i, j: (0, j)),       # bias
                ],
                out_specs=pl.BlockSpec((tm, tn), lambda i, j: (i, j)),
            ),
            compiler_params=pltpu.CompilerParams(
                dimension_semantics=("parallel", "parallel"),
                vmem_limit_bytes=budget,
            ),
        )(xp, wt, bias)
    else:
        # --- robustness fallback: k-tiled accumulator path --------------------
        tm_cap, tn_cap, tk_cap = acc_tile_caps
        tm = _pick_tile(B_pad, tm_cap, 8)
        tn = _pick_tile(D_pad, tn_cap, 128)
        tk = _pick_tile(D_pad, tk_cap, 128)
        grid = (B_pad // tm, D_pad // tn, D_pad // tk)
        out = pl.pallas_call(
            _linear_acc_kernel,
            out_shape=jax.ShapeDtypeStruct((B_pad, D_pad), out_dtype),
            grid_spec=pltpu.PrefetchScalarGridSpec(
                num_scalar_prefetch=0,
                grid=grid,
                in_specs=[
                    pl.BlockSpec((tm, tk), lambda i, j, k: (i, k)),   # x tile
                    pl.BlockSpec((tk, tn), lambda i, j, k: (k, j)),   # Wt tile
                    pl.BlockSpec((1, tn), lambda i, j, k: (0, j)),    # bias tile
                ],
                out_specs=pl.BlockSpec((tm, tn), lambda i, j, k: (i, j)),
                scratch_shapes=[pltpu.VMEM((tm, tn), jnp.float32)],
            ),
            compiler_params=pltpu.CompilerParams(
                dimension_semantics=("parallel", "parallel", "arbitrary"),
                vmem_limit_bytes=budget,
            ),
        )(xp, wt, bias)

    if B_pad != B or D_pad != D:
        out = out[:B, :D]
    return out


# ----------------------------- params --------------------------------------- #

def init_projector_params(key, repr_dim, dtype=jnp.float32):
    """nn.Linear default init: U(-1/sqrt(in_features), 1/sqrt(in_features))."""
    kw, kb = jax.random.split(key)
    bound = 1.0 / math.sqrt(repr_dim)
    weight = jax.random.uniform(kw, (repr_dim, repr_dim), dtype,
                                minval=-bound, maxval=bound)
    bias = jax.random.uniform(kb, (repr_dim,), dtype,
                              minval=-bound, maxval=bound)
    return {"weight": weight, "bias": bias}


def prepare_projector_params(params, mm_dtype=jnp.bfloat16):
    """One-time prep: transpose W -> Wt, pad to a multiple of 128, cast.
    Done ONCE at init so no per-forward O(D^2) pad/cast/transpose pass.
    mm_dtype=bfloat16 (default) halves W HBM traffic; use jnp.float32 to
    match PyTorch f32 Linear numerics exactly."""
    w = jnp.asarray(params["weight"])
    b = jnp.asarray(params["bias"])
    D = w.shape[0]
    assert w.shape == (D, D) and b.shape == (D,)
    D_pad = _round_up(D, 128)
    wt = w.T                                   # standard x @ Wt contraction
    if D_pad != D:
        wt = jnp.pad(wt, ((0, D_pad - D), (0, D_pad - D)))
        b = jnp.pad(b, (0, D_pad - D))
    return {
        "wt": wt.astype(mm_dtype),
        "bias": b.reshape(1, D_pad).astype(jnp.float32),
        "repr_dim": D,
        "d_pad": D_pad,
    }


# ----------------------------- public wrapper ------------------------------- #

def identity_encoder_forward(obs, prepared=None, *, project_for_state_input=False,
                             min_pallas_elems=256 * 128,
                             force_acc_path=False,
                             acc_tile_caps=(256, 512, 2048)):
    """Pallas implementation of IdentityEncoder.forward.

    obs: (batch, repr_dim)
    prepared: output of prepare_projector_params(...) when
              project_for_state_input is True.
    """
    if not project_for_state_input:
        # Identity path: no kernel, no copy -- literally free.
        return obs

    B, D = obs.shape
    assert prepared is not None and prepared["repr_dim"] == D

    if B * D < min_pallas_elems and not force_acc_path:
        # Tiny inputs: a kernel launch is pure overhead; let XLA fuse this.
        wt = prepared["wt"][:D, :D].astype(jnp.float32)
        bias = prepared["bias"][0, :D]
        return (obs.astype(jnp.float32) @ wt + bias).astype(obs.dtype)

    return _linear_pallas(obs, prepared, force_acc_path=force_acc_path,
                          acc_tile_caps=acc_tile_caps)


# ----------------------------- main ----------------------------------------- #

if __name__ == "__main__":
    key = jax.random.PRNGKey(0)
    k_obs, k_params, k_obs2, k_params2 = jax.random.split(key, 4)

    # ---- identity path: returns obs directly (no kernel, no copy) -----------
    batch, repr_dim = 8, 32
    obs = jax.random.normal(k_obs, (batch, repr_dim), jnp.float32)
    z_id = identity_encoder_forward(obs, project_for_state_input=False)
    assert z_id is obs, "identity path should be a no-op"

    # ---- linear path, tiny shape, bf16 weights, forced Pallas (resident W) --
    params = init_projector_params(k_params, repr_dim)
    prepared_bf16 = prepare_projector_params(params)               # bf16 default
    ref_small = obs @ params["weight"].T + params["bias"]

    z_small = identity_encoder_forward(obs, prepared_bf16,
                                       project_for_state_input=True,
                                       min_pallas_elems=0)         # force Pallas
    z_small = jax.block_until_ready(z_small)
    assert jnp.allclose(z_small, ref_small, atol=5e-2, rtol=5e-2), \
        "linear path (bf16, resident W) mismatch"

    # size-gated XLA fallback still matches
    z_fb = jax.block_until_ready(
        identity_encoder_forward(obs, prepared_bf16, project_for_state_input=True))
    assert jnp.allclose(z_fb, ref_small, atol=5e-2, rtol=5e-2), "fallback mismatch"

    # ---- linear path, f32 weights, multi-tile resident-W grid ----------------
    batch2, repr_dim2 = 16, 384
    obs2 = jax.random.normal(k_obs2, (batch2, repr_dim2), jnp.float32)
    params2 = init_projector_params(k_params2, repr_dim2)
    prepared_f32 = prepare_projector_params(params2, mm_dtype=jnp.float32)
    ref2 = obs2 @ params2["weight"].T + params2["bias"]

    z2 = identity_encoder_forward(obs2, prepared_f32, project_for_state_input=True,
                                  min_pallas_elems=0)               # force Pallas
    z2 = jax.block_until_ready(z2)
    assert jnp.allclose(z2, ref2, atol=1e-4, rtol=1e-4), \
        "linear path (f32, resident W) mismatch"

    # ---- robustness fallback: forced k-tiled accumulator path ----------------
    z2_acc = identity_encoder_forward(obs2, prepared_f32, project_for_state_input=True,
                                      min_pallas_elems=0, force_acc_path=True,
                                      acc_tile_caps=(8, 128, 128))  # multi-k grid
    z2_acc = jax.block_until_ready(z2_acc)
    assert jnp.allclose(z2_acc, ref2, atol=1e-4, rtol=1e-4), \
        "linear path (k-tiled accumulator) mismatch"

    # ---- bf16 weights at the larger shape (looser tolerance) -----------------
    prepared2_bf16 = prepare_projector_params(params2)
    z2_bf16 = identity_encoder_forward(obs2, prepared2_bf16,
                                       project_for_state_input=True,
                                       min_pallas_elems=0)
    z2_bf16 = jax.block_until_ready(z2_bf16)
    assert jnp.allclose(z2_bf16, ref2, atol=5e-2, rtol=5e-2), \
        "linear path (bf16, larger shape) mismatch"

    print("KERNEL_OK")
</pallas_src>

<mosaic_0001>
module attributes {stable_mosaic.version = 11 : i64} {
  func.func @_linear_noacc_kernel(%arg0: i32, %arg1: i32, %arg2: memref<8x128xbf16, #tpu.memory_space<vmem>>, %arg3: memref<128x128xbf16, #tpu.memory_space<vmem>>, %arg4: memref<1x128xf32, #tpu.memory_space<vmem>>, %arg5: memref<8x128xf32, #tpu.memory_space<vmem>>) attributes {dimension_semantics = [#tpu.dimension_semantics<parallel>, #tpu.dimension_semantics<parallel>], iteration_bounds = array<i64: 1, 1>, scalar_prefetch = 0 : i64, scratch_operands = 0 : i64, tpu.core_type = #tpu.core_type<tc>, window_params = [{transform_indices = @transform_0, window_bounds = array<i64: 8, 128>}, {transform_indices = @transform_1, window_bounds = array<i64: 128, 128>}, {transform_indices = @transform_2, window_bounds = array<i64: 1, 128>}, {transform_indices = @transform_3, window_bounds = array<i64: 8, 128>}]} {
    %c0 = arith.constant 0 : index
    %c0_0 = arith.constant 0 : index
    %0 = vector.load %arg2[%c0, %c0_0] : memref<8x128xbf16, #tpu.memory_space<vmem>>, vector<8x128xbf16>
    %c0_1 = arith.constant 0 : index
    %c0_2 = arith.constant 0 : index
    %1 = vector.load %arg3[%c0_1, %c0_2] : memref<128x128xbf16, #tpu.memory_space<vmem>>, vector<128x128xbf16>
    %cst = arith.constant dense<0.000000e+00> : vector<8x128xf32>
    %2 = tpu.matmul %0, %1, %cst {dimension_numbers = #tpu.dot_dimension_numbers<[1], [0], [0], [1], [0, 0, 1, 1], [], []>} : vector<8x128xbf16>, vector<128x128xbf16>, vector<8x128xf32> -> vector<8x128xf32>
    %c0_3 = arith.constant 0 : index
    %c0_4 = arith.constant 0 : index
    %3 = vector.load %arg4[%c0_3, %c0_4] : memref<1x128xf32, #tpu.memory_space<vmem>>, vector<1x128xf32>
    %4 = vector.broadcast %3 : vector<1x128xf32> to vector<8x128xf32>
    %5 = arith.addf %2, %4 : vector<8x128xf32>
    %c0_5 = arith.constant 0 : index
    %c0_6 = arith.constant 0 : index
    %6 = vector.load %arg5[%c0_5, %c0_6] : memref<8x128xf32, #tpu.memory_space<vmem>>, vector<8x128xf32>
    tpu.vector_store %arg5[%c0_5, %c0_6], %5 {strides = array<i32>} : memref<8x128xf32, #tpu.memory_space<vmem>>, vector<8x128xf32>,
    return
  }
  func.func @transform_0(%arg0: i32, %arg1: i32) -> (i32, i32) {
    %c0_i32 = arith.constant 0 : i32
    %c0_i32_0 = arith.constant 0 : i32
    return %arg0, %c0_i32 : i32, i32
  }
  func.func @transform_1(%arg0: i32, %arg1: i32) -> (i32, i32) {
    %c0_i32 = arith.constant 0 : i32
    %c0_i32_0 = arith.constant 0 : i32
    return %c0_i32, %arg1 : i32, i32
  }
  func.func @transform_2(%arg0: i32, %arg1: i32) -> (i32, i32) {
    %c0_i32 = arith.constant 0 : i32
    %c0_i32_0 = arith.constant 0 : i32
    return %c0_i32, %arg1 : i32, i32
  }
  func.func @transform_3(%arg0: i32, %arg1: i32) -> (i32, i32) {
    %c0_i32 = arith.constant 0 : i32
    return %arg0, %arg1 : i32, i32
  }
}

</mosaic_0001>

<llo_original>
// kernel: tpu_custom_call.1
$region0: #{tpu_custom_call.1}
  #allocation0 [shape = 'u32[]', space=smem, size = 0x4, offset = 0x4, fixed_abs, tag = 'smem constant byte address 0x4 - core index']
  #allocation1 [shape = 'u32[72,128]{1,0:T(1,128)}', space=vmem, size = 0x9000, scoped, tag = 'internal scratch']
  %s0 = inlined_call_operand.hbm [shape: bf16[8,128], index: 0, kind: input, shape index: {}]
  %s1 = inlined_call_operand.hbm [shape: bf16[128,128], index: 1, kind: input, shape index: {}]
  %s2 = inlined_call_operand.vmem [shape: f32[1,128], index: 2, kind: input, shape index: {}]
  %s3 = inlined_call_operand.hbm [shape: f32[8,128], index: 3, kind: output, shape index: {}]
  %s4 = sld [smem:[#allocation0]]
  $region30: #{tpu_custom_call.1} parent=0
    _
  %s6 = ssub.s32 1, %s4
  %s7 = scalar_select 0, %s6, %s4
  $region1: #{tpu_custom_call.1} parent=0
    #allocation2 [shape = 'u8[2048]{0}', space=vmem, size = 0x800, scoped, tag = 'input window, operand 0, single buffered']
    #allocation3 [shape = 's32[1]{0}', space=sflag, size = 0x4, scoped, tag = 'scoped memory for tpu_custom_call.1']
    #allocation4 [shape = 's32[1]{0}', space=sflag, size = 0x4, scoped, tag = 'scoped memory for tpu_custom_call.1']
    #allocation5 [shape = 'u8[32768]{0}', space=vmem, size = 0x8000, scoped, tag = 'input window, operand 1, single buffered']
    #allocation6 [shape = 's32[1]{0}', space=sflag, size = 0x4, scoped, tag = 'scoped memory for tpu_custom_call.1']
    #allocation7 [shape = 'u8[4096]{0}', space=vmem, size = 0x1000, scoped, tag = 'output window, operand 0, single buffered']
    %8 = vsyncpa [#allocation3], 0
    %9 = vsyncpa [#allocation6], 0
    %10 = vsyncpa [#allocation4], 0
    // Predicated region
    $region2: #{tpu_custom_call.1} parent=1 // pred_check
      _
    $region3: #{tpu_custom_call.1} parent=1 // pred_check_branch
      %12 = sbr.rel (0) target = $region5
    $region4: #{tpu_custom_call.1} parent=1 // pred_region
      %14 = vsyncadd [#allocation3], 0
      %s16 = sshll.u32 %s0, 4
      %s17 = int_to_ptr.hbm [resolvable:$true] %s16
      %s18 = sshll.u32 [#allocation2], 4
      %s19 = int_to_ptr.vmem [resolvable:$true] %s18
      %21 = dma.hbm_to_vmem [thread:$0]  %s17, 64, %s19, [#allocation3]
    $region5: #{tpu_custom_call.1} parent=1 // pred_fallthru
      _
    // Predicated region
    $region6: #{tpu_custom_call.1} parent=1 // pred_check
      _
    $region7: #{tpu_custom_call.1} parent=1 // pred_check_branch
      %23 = sbr.rel (0) target = $region9
    $region8: #{tpu_custom_call.1} parent=1 // pred_region
      %25 = vsyncadd [#allocation6], 0
      %s26 = sshll.u32 %s1, 4
      %s27 = int_to_ptr.hbm [resolvable:$true] %s26
      %s28 = sshll.u32 [#allocation5], 4
      %s29 = int_to_ptr.vmem [resolvable:$true] %s28
      %34 = dma.hbm_to_vmem [thread:$0]  %s27, 1024, %s29, [#allocation6], 64, 64, 4
    $region9: #{tpu_custom_call.1} parent=1 // pred_fallthru
      _
    // Predicated region
    $region10: #{tpu_custom_call.1} parent=1 // pred_check
      _
    $region11: #{tpu_custom_call.1} parent=1 // pred_check_branch
      %36 = sbr.rel (0) target = $region13
    $region12: #{tpu_custom_call.1} parent=1 // pred_region
      _
    $region13: #{tpu_custom_call.1} parent=1 // pred_fallthru
      _
    // Predicated region
    $region14: #{tpu_custom_call.1} parent=1 // pred_check
      _
    $region15: #{tpu_custom_call.1} parent=1 // pred_check_branch
      %38 = sbr.rel (0) target = $region17
    $region16: #{tpu_custom_call.1} parent=1 // pred_region
      %40 = dma.done [#allocation3], 64
    $region17: #{tpu_custom_call.1} parent=1 // pred_fallthru
      _
    // Predicated region
    $region18: #{tpu_custom_call.1} parent=1 // pred_check
      _
    $region19: #{tpu_custom_call.1} parent=1 // pred_check_branch
      %42 = sbr.rel (0) target = $region21
    $region20: #{tpu_custom_call.1} parent=1 // pred_region
      %44 = dma.done [#allocation6], 1024
    $region21: #{tpu_custom_call.1} parent=1 // pred_fallthru
      _
    %v45 = vld [vmem:[#allocation2] sm:$0xf]
    %v46 = vld [vmem:[#allocation5] sm:$0xf]
    %v47 = vld [vmem:[#allocation5 + $0x4] sm:$0xf]
    %v48 = vld [vmem:[#allocation5 + $0x8] sm:$0xf]
    %v49 = vld [vmem:[#allocation5 + $0xc] sm:$0xf]
    %v50 = vld [vmem:[#allocation5 + $0x10] sm:$0xf]
    %v51 = vld [vmem:[#allocation5 + $0x14] sm:$0xf]
    %v52 = vld [vmem:[#allocation5 + $0x18] sm:$0xf]
    %v53 = vld [vmem:[#allocation5 + $0x1c] sm:$0xf]
    %v54 = vld [vmem:[#allocation5 + $0x20] sm:$0xf]
    %v55 = vld [vmem:[#allocation5 + $0x24] sm:$0xf]
    %v56 = vld [vmem:[#allocation5 + $0x28] sm:$0xf]
    %v57 = vld [vmem:[#allocation5 + $0x2c] sm:$0xf]
    %v58 = vld [vmem:[#allocation5 + $0x30] sm:$0xf]
    %v59 = vld [vmem:[#allocation5 + $0x34] sm:$0xf]
    %v60 = vld [vmem:[#allocation5 + $0x38] sm:$0xf]
    %v61 = vld [vmem:[#allocation5 + $0x3c] sm:$0xf]
    %v62 = vld [vmem:[%s2] sm:$0x1]
    %v64 = vperm.slane %v62, 0
    %v82 = vunpack.c.l.b16 %v46
    %v83 = vunpack.c.l.b16 %v47
    %v84 = vunpack.c.l.b16 %v48
    %v85 = vunpack.c.l.b16 %v49
    %v86 = vunpack.c.l.b16 %v50
    %v87 = vunpack.c.l.b16 %v51
    %v88 = vunpack.c.l.b16 %v52
    %v89 = vunpack.c.l.b16 %v53
    %v90 = vunpack.c.l.b16 %v54
    %v91 = vunpack.c.l.b16 %v55
    %v92 = vunpack.c.l.b16 %v56
    %v93 = vunpack.c.l.b16 %v57
    %v94 = vunpack.c.l.b16 %v58
    %v95 = vunpack.c.l.b16 %v59
    %v96 = vunpack.c.l.b16 %v60
    %v97 = vunpack.c.l.b16 %v61
    %v98 = vpack.c.b16 %v83, %v82
    %v99 = vpack.c.b16 %v85, %v84
    %v100 = vpack.c.b16 %v87, %v86
    %v101 = vpack.c.b16 %v89, %v88
    %v102 = vpack.c.b16 %v91, %v90
    %v103 = vpack.c.b16 %v93, %v92
    %v104 = vpack.c.b16 %v95, %v94
    %v105 = vpack.c.b16 %v97, %v96
    %114 = vmatpush.bf16.msra.mxu0 %v105
    %115 = vmatpush.bf16.msra.mxu0 %v104
    %116 = vmatpush.bf16.msra.mxu0 %v103
    %117 = vmatpush.bf16.msra.mxu0 %v102
    %118 = vmatpush.bf16.msra.mxu0 %v101
    %119 = vmatpush.bf16.msra.mxu0 %v100
    %120 = vmatpush.bf16.msra.mxu0 %v99
    %121 = vmatpush.bf16.msra.mxu0 %v98
    %122 = vmatmul.bf16.gmra.mxu0 %v45
    %v123 = vpop.f32.mrf.mxu0
    %v124 = vadd.f32 %v64, %v123
    %v125 = vpop.f32.mrf.mxu0
    %126 = vdwg.mxu0
    %127 = vst [vmem:[#allocation7] sm:$0xff] %v124
    // Predicated region
    $region22: #{tpu_custom_call.1} parent=1 // pred_check
      _
    $region23: #{tpu_custom_call.1} parent=1 // pred_check_branch
      %129 = sbr.rel (0) target = $region25
    $region24: #{tpu_custom_call.1} parent=1 // pred_region
      %131 = vsyncadd [#allocation4], 0
      %s133 = sshll.u32 [#allocation7], 4
      %s134 = int_to_ptr.vmem [resolvable:$true] %s133
      %s135 = sshll.u32 %s3, 4
      %s136 = int_to_ptr.hbm [resolvable:$true] %s135
      %138 = dma.vmem_to_hbm [thread:$0]  %s134, 128, %s136, [#allocation4]
    $region25: #{tpu_custom_call.1} parent=1 // pred_fallthru
      _
    // Predicated region
    $region26: #{tpu_custom_call.1} parent=1 // pred_check
      _
    $region27: #{tpu_custom_call.1} parent=1 // pred_check_branch
      %140 = sbr.rel (0) target = $region29
    $region28: #{tpu_custom_call.1} parent=1 // pred_region
      %142 = dma.done [#allocation4], 128
    $region29: #{tpu_custom_call.1} parent=1 // pred_fallthru
      _
    %143 = vsyncpa [#allocation3], 1
    %144 = vsyncpa [#allocation6], 1
    %145 = vsyncpa [#allocation4], 1

</llo_original>
